<compile_context>
chip_gen: v7x
topology: tpu7x:2x2x1
jax: 0.10.0
libtpu: 0.0.40
codegen_flags: <defaults>
</compile_context>

<pallas_src>
import functools

import jax
import jax.numpy as jnp
from jax.experimental import pallas as pl
from jax.experimental.pallas import tpu as pltpu

IN_FEATURES = 5
OUT_FEATURES = 10


def _linear_kernel(x_ref, w_ref, b_ref, o_ref):
    # One MXU matmul per batch tile; bias folded in with a sublane-broadcast add.
    acc = jnp.dot(x_ref[...], w_ref[...], preferred_element_type=jnp.float32)
    o_ref[...] = (acc + b_ref[...]).astype(o_ref.dtype)


def _pick_tile(batch: int, tile_b: int) -> int:
    """Rows per grid step (static).

    Small batches -> one step (per-step overhead dominates any megacore win).
    Otherwise at least two 'parallel' steps (v7x has 2 TensorCores), capped at
    tile_b rows/step and rounded up to a multiple of 8 sublanes.
    """
    if batch <= min(tile_b, 512):
        return batch                       # single full-dim block (always legal)
    tb = min(tile_b, -(-batch // 2))       # cdiv(batch, 2)
    return max(8, ((tb + 7) // 8) * 8)


@functools.partial(jax.jit, static_argnames=("tile_b",))
def linear_pallas(x, w, b, *, tile_b=4096):
    """x: (B, 5) f32 -> (B, 10) f32; same math as PyTorch nn.Linear(5, 10).

    w: (IN_FEATURES, OUT_FEATURES) == W_torch.T ; b: (OUT_FEATURES,).
    """
    batch, n_in = x.shape
    assert n_in == IN_FEATURES, f"expected {IN_FEATURES} input features, got {n_in}"
    assert w.shape == (IN_FEATURES, OUT_FEATURES)
    assert b.shape == (OUT_FEATURES,)

    tb = _pick_tile(batch, tile_b)
    grid = (pl.cdiv(batch, tb),)
    b2d = b.reshape(1, OUT_FEATURES).astype(x.dtype)   # free metadata reshape
    w = w.astype(x.dtype)

    return pl.pallas_call(
        _linear_kernel,
        out_shape=jax.ShapeDtypeStruct((batch, OUT_FEATURES), x.dtype),
        grid=grid,
        in_specs=[
            # x: tiled over batch; last block dim (5) equals full array dim.
            pl.BlockSpec((tb, IN_FEATURES), lambda i: (i, 0)),
            # W: resident (block == full array), DMA'd once.
            pl.BlockSpec((IN_FEATURES, OUT_FEATURES), lambda i: (0, 0)),
            # bias: resident (block == full array).
            pl.BlockSpec((1, OUT_FEATURES), lambda i: (0, 0)),
        ],
        # Dense (B, 10) output: last block dim equals full array dim -> legal;
        # writes 40 useful bytes/row instead of 512, no post-call slice.
        out_specs=pl.BlockSpec((tb, OUT_FEATURES), lambda i: (i, 0)),
        compiler_params=pltpu.CompilerParams(
            dimension_semantics=("parallel",)),
    )(x, w, b2d)


if __name__ == "__main__":
    BATCH = 8

    key = jax.random.PRNGKey(0)
    kx, kw, kb = jax.random.split(key, 3)

    # Deterministic params (uniform, PyTorch-like init range).
    bound = 1.0 / (IN_FEATURES ** 0.5)
    # PyTorch weight is (OUT, IN); we store its transpose, (IN, OUT).
    w = jax.random.uniform(kw, (IN_FEATURES, OUT_FEATURES),
                           minval=-bound, maxval=bound, dtype=jnp.float32)
    b = jax.random.uniform(kb, (OUT_FEATURES,),
                           minval=-bound, maxval=bound, dtype=jnp.float32)
    x = jax.random.normal(kx, (BATCH, IN_FEATURES), dtype=jnp.float32)

    out = linear_pallas(x, w, b)
    jax.block_until_ready(out)
    ref = x @ w + b
    assert out.shape == (BATCH, OUT_FEATURES)
    assert jnp.allclose(out, ref, atol=1e-5, rtol=1e-5)

    # Multi-step tiled path with a ragged (partial) last tile, no wrapper pad.
    x_big = jax.random.normal(kx, (300, IN_FEATURES), dtype=jnp.float32)
    out_big = linear_pallas(x_big, w, b, tile_b=128)     # grid = 3, tail of 44 rows
    jax.block_until_ready(out_big)
    assert out_big.shape == (300, OUT_FEATURES)
    assert jnp.allclose(out_big, x_big @ w + b, atol=1e-5, rtol=1e-5)

    # Mid-size batch: tile heuristic guarantees >= 2 'parallel' steps (v7x megacore).
    x_mid = jax.random.normal(kb, (600, IN_FEATURES), dtype=jnp.float32)
    out_mid = linear_pallas(x_mid, w, b)                 # tb = 304, grid = 2
    jax.block_until_ready(out_mid)
    assert jnp.allclose(out_mid, x_mid @ w + b, atol=1e-5, rtol=1e-5)

    print("KERNEL_OK")
</pallas_src>

<mosaic_0001>
module attributes {stable_mosaic.version = 11 : i64} {
  func.func @_linear_kernel(%arg0: i32, %arg1: memref<8x5xf32, #tpu.memory_space<vmem>>, %arg2: memref<5x10xf32, #tpu.memory_space<vmem>>, %arg3: memref<1x10xf32, #tpu.memory_space<vmem>>, %arg4: memref<8x10xf32, #tpu.memory_space<vmem>>) attributes {dimension_semantics = [#tpu.dimension_semantics<parallel>], iteration_bounds = array<i64: 1>, scalar_prefetch = 0 : i64, scratch_operands = 0 : i64, tpu.core_type = #tpu.core_type<tc>, window_params = [{transform_indices = @transform_0, window_bounds = array<i64: 8, 5>}, {pipeline_mode = #tpu.pipeline_mode<synchronous>, transform_indices = @transform_1, window_bounds = array<i64: 5, 10>}, {pipeline_mode = #tpu.pipeline_mode<synchronous>, transform_indices = @transform_2, window_bounds = array<i64: 1, 10>}, {transform_indices = @transform_3, window_bounds = array<i64: 8, 10>}]} {
    %c0 = arith.constant 0 : index
    %c0_0 = arith.constant 0 : index
    %0 = vector.load %arg1[%c0, %c0_0] : memref<8x5xf32, #tpu.memory_space<vmem>>, vector<8x5xf32>
    %c0_1 = arith.constant 0 : index
    %c0_2 = arith.constant 0 : index
    %1 = vector.load %arg2[%c0_1, %c0_2] : memref<5x10xf32, #tpu.memory_space<vmem>>, vector<5x10xf32>
    %cst = arith.constant dense<0.000000e+00> : vector<8x10xf32>
    %2 = tpu.matmul %0, %1, %cst {dimension_numbers = #tpu.dot_dimension_numbers<[1], [0], [0], [1], [0, 0, 1, 1], [], []>} : vector<8x5xf32>, vector<5x10xf32>, vector<8x10xf32> -> vector<8x10xf32>
    %c0_3 = arith.constant 0 : index
    %c0_4 = arith.constant 0 : index
    %3 = vector.load %arg3[%c0_3, %c0_4] : memref<1x10xf32, #tpu.memory_space<vmem>>, vector<1x10xf32>
    %4 = vector.broadcast %3 : vector<1x10xf32> to vector<8x10xf32>
    %5 = arith.addf %2, %4 : vector<8x10xf32>
    %c0_5 = arith.constant 0 : index
    %c0_6 = arith.constant 0 : index
    %6 = vector.load %arg4[%c0_5, %c0_6] : memref<8x10xf32, #tpu.memory_space<vmem>>, vector<8x10xf32>
    tpu.vector_store %arg4[%c0_5, %c0_6], %5 {strides = array<i32>} : memref<8x10xf32, #tpu.memory_space<vmem>>, vector<8x10xf32>,
    return
  }
  func.func @transform_0(%arg0: i32) -> (i32, i32) {
    %c0_i32 = arith.constant 0 : i32
    %c0_i32_0 = arith.constant 0 : i32
    return %arg0, %c0_i32 : i32, i32
  }
  func.func @transform_1(%arg0: i32) -> (i32, i32) {
    %c0_i32 = arith.constant 0 : i32
    %c0_i32_0 = arith.constant 0 : i32
    %c0_i32_1 = arith.constant 0 : i32
    return %c0_i32, %c0_i32_0 : i32, i32
  }
  func.func @transform_2(%arg0: i32) -> (i32, i32) {
    %c0_i32 = arith.constant 0 : i32
    %c0_i32_0 = arith.constant 0 : i32
    %c0_i32_1 = arith.constant 0 : i32
    return %c0_i32, %c0_i32_0 : i32, i32
  }
  func.func @transform_3(%arg0: i32) -> (i32, i32) {
    %c0_i32 = arith.constant 0 : i32
    %c0_i32_0 = arith.constant 0 : i32
    return %arg0, %c0_i32 : i32, i32
  }
}

</mosaic_0001>

<llo_original>
// kernel: linear_pallas.1
$region0: #{linear_pallas.1}
  #allocation0 [shape = 'u32[]', space=smem, size = 0x4, offset = 0x4, fixed_abs, tag = 'smem constant byte address 0x4 - core index']
  #allocation1 [shape = 'u32[144,128]{1,0:T(1,128)}', space=vmem, size = 0x12000, scoped, tag = 'internal scratch']
  %s0 = inlined_call_operand.hbm [shape: f32[8,5], index: 0, kind: input, shape index: {}]
  %s1 = inlined_call_operand.hbm [shape: f32[5,10], index: 1, kind: input, shape index: {}]
  %s2 = inlined_call_operand.vmem [shape: f32[1,10], index: 2, kind: input, shape index: {}]
  %s3 = inlined_call_operand.hbm [shape: f32[8,10], index: 3, kind: output, shape index: {}]
  %s4 = sld [smem:[#allocation0]]
  $region30: #{linear_pallas.1} parent=0
    _
  %s6 = ssub.s32 1, %s4
  %s7 = scalar_select 0, %s6, %s4
  $region1: #{linear_pallas.1} parent=0
    #allocation2 [shape = 'u8[4096]{0}', space=vmem, size = 0x1000, scoped, tag = 'input window, operand 0, single buffered']
    #allocation3 [shape = 's32[1]{0}', space=sflag, size = 0x4, scoped, tag = 'scoped memory for linear_pallas.1']
    #allocation4 [shape = 's32[1]{0}', space=sflag, size = 0x4, scoped, tag = 'scoped memory for linear_pallas.1']
    #allocation5 [shape = 'u8[4096]{0}', space=vmem, size = 0x1000, scoped, tag = 'input window, operand 1, single buffered']
    #allocation6 [shape = 's32[1]{0}', space=sflag, size = 0x4, scoped, tag = 'scoped memory for linear_pallas.1']
    #allocation7 [shape = 'u8[4096]{0}', space=vmem, size = 0x1000, scoped, tag = 'output window, operand 0, single buffered']
    %8 = vsyncpa [#allocation3], 0
    %9 = vsyncpa [#allocation6], 0
    %10 = vsyncpa [#allocation4], 0
    // Predicated region
    $region2: #{linear_pallas.1} parent=1 // pred_check
      _
    $region3: #{linear_pallas.1} parent=1 // pred_check_branch
      %12 = sbr.rel (0) target = $region5
    $region4: #{linear_pallas.1} parent=1 // pred_region
      %s14 = ssub.s32 128, 128
      %15 = vsyncadd [#allocation3], %s14
      %s17 = sshll.u32 [#allocation2], 4
      %s18 = int_to_ptr.vmem [resolvable:$true] %s17
      %20 = dma.hbm_to_vmem [thread:$0]  %s0, 128, %s18, [#allocation3]
    $region5: #{linear_pallas.1} parent=1 // pred_fallthru
      _
    // Predicated region
    $region6: #{linear_pallas.1} parent=1 // pred_check
      _
    $region7: #{linear_pallas.1} parent=1 // pred_check_branch
      %22 = sbr.rel (0) target = $region9
    $region8: #{linear_pallas.1} parent=1 // pred_region
      %s24 = ssub.s32 128, 128
      %25 = vsyncadd [#allocation6], %s24
      %s27 = sshll.u32 [#allocation5], 4
      %s28 = int_to_ptr.vmem [resolvable:$true] %s27
      %30 = dma.hbm_to_vmem [thread:$0]  %s1, 128, %s28, [#allocation6]
    $region9: #{linear_pallas.1} parent=1 // pred_fallthru
      _
    // Predicated region
    $region10: #{linear_pallas.1} parent=1 // pred_check
      _
    $region11: #{linear_pallas.1} parent=1 // pred_check_branch
      %32 = sbr.rel (0) target = $region13
    $region12: #{linear_pallas.1} parent=1 // pred_region
      _
    $region13: #{linear_pallas.1} parent=1 // pred_fallthru
      _
    // Predicated region
    $region14: #{linear_pallas.1} parent=1 // pred_check
      _
    $region15: #{linear_pallas.1} parent=1 // pred_check_branch
      %34 = sbr.rel (0) target = $region17
    $region16: #{linear_pallas.1} parent=1 // pred_region
      %35 = dma.done [#allocation3], 128
    $region17: #{linear_pallas.1} parent=1 // pred_fallthru
      _
    // Predicated region
    $region18: #{linear_pallas.1} parent=1 // pred_check
      _
    $region19: #{linear_pallas.1} parent=1 // pred_check_branch
      %37 = sbr.rel (0) target = $region21
    $region20: #{linear_pallas.1} parent=1 // pred_region
      %38 = dma.done [#allocation6], 128
    $region21: #{linear_pallas.1} parent=1 // pred_fallthru
      _
    %v39 = vld [vmem:[#allocation2] sm:$0xff]
    %v40 = vld [vmem:[#allocation5] sm:$0x1f]
    %v41 = vld [vmem:[%s2] sm:$0x1]
    %v43 = vlaneseq
    %v44 = vshrl.u32 %v43, 7
    %v45 = vsub.s32 0, %v44
    %v46 = vrot.slane %v41, %v45
    %vm48 = vcmask 39936
    %v50 = vsel %vm48, %v39, 0
    %vm52 = vcmask 1044480
    %v54 = vsel %vm52, %v40, 0
    %56 = vmatprep.subr.mxu0 0.0
    %57 = vmatpush1.msra.mxu0 %v54
    %58 = vmatprep.subr.mxu0 0.0
    %59 = vmatpush1.msra.mxu0 0.0
    %60 = vmatprep.subr.mxu0 0.0
    %61 = vmatpush1.msra.mxu0 0.0
    %62 = vmatprep.subr.mxu0 0.0
    %63 = vmatpush1.msra.mxu0 0.0
    %64 = vmatprep.subr.mxu0 0.0
    %65 = vmatpush1.msra.mxu0 0.0
    %66 = vmatprep.subr.mxu0 0.0
    %67 = vmatpush1.msra.mxu0 0.0
    %68 = vmatprep.subr.mxu0 0.0
    %69 = vmatpush1.msra.mxu0 0.0
    %70 = vmatprep.subr.mxu0 0.0
    %71 = vmatpush1.msra.mxu0 0.0
    %72 = vmatprep.subr.mxu0 0.0
    %73 = vmatpush1.msra.mxu0 0.0
    %74 = vmatprep.subr.mxu0 0.0
    %75 = vmatpush1.msra.mxu0 0.0
    %76 = vmatprep.subr.mxu0 0.0
    %77 = vmatpush1.msra.mxu0 0.0
    %78 = vmatprep.subr.mxu0 0.0
    %79 = vmatpush1.msra.mxu0 0.0
    %80 = vmatprep.subr.mxu0 0.0
    %81 = vmatpush1.msra.mxu0 0.0
    %82 = vmatprep.subr.mxu0 0.0
    %83 = vmatpush1.msra.mxu0 0.0
    %84 = vmatprep.subr.mxu0 0.0
    %85 = vmatpush1.msra.mxu0 0.0
    %86 = vmatprep.subr.mxu0 0.0
    %87 = vmatpush1.msra.mxu0 0.0
    %88 = vmatprep.subr.mxu0 0.0
    %89 = vmatpush1.msra.mxu0 0.0
    %90 = vmatprep.subr.mxu0 0.0
    %91 = vmatpush1.msra.mxu0 0.0
    %92 = vmatprep.subr.mxu0 0.0
    %93 = vmatpush1.msra.mxu0 0.0
    %94 = vmatprep.subr.mxu0 0.0
    %95 = vmatpush1.msra.mxu0 0.0
    %96 = vmatprep.subr.mxu0 0.0
    %97 = vmatpush1.msra.mxu0 0.0
    %98 = vmatprep.subr.mxu0 0.0
    %99 = vmatpush1.msra.mxu0 0.0
    %100 = vmatprep.subr.mxu0 0.0
    %101 = vmatpush1.msra.mxu0 0.0
    %102 = vmatprep.subr.mxu0 0.0
    %103 = vmatpush1.msra.mxu0 0.0
    %104 = vmatprep.subr.mxu0 0.0
    %105 = vmatpush1.msra.mxu0 0.0
    %106 = vmatprep.subr.mxu0 0.0
    %107 = vmatpush1.msra.mxu0 0.0
    %108 = vmatprep.subr.mxu0 0.0
    %109 = vmatpush1.msra.mxu0 0.0
    %110 = vmatprep.subr.mxu0 0.0
    %111 = vmatpush1.msra.mxu0 0.0
    %112 = vmatprep.subr.mxu0 0.0
    %113 = vmatpush1.msra.mxu0 0.0
    %114 = vmatprep.subr.mxu0 0.0
    %115 = vmatpush1.msra.mxu0 0.0
    %116 = vmatprep.subr.mxu0 0.0
    %117 = vmatpush1.msra.mxu0 0.0
    %118 = vmatprep.subr.mxu0 0.0
    %119 = vmatpush1.msra.mxu0 0.0
    %120 = vmatprep.mubr.f32.mxu0 0.0
    %121 = vmatmul.mubr.f32.gmra.mrb[0].mxu0 %v50
    %v122 = vpop.f32.mrb[0].mxu0
    %v123 = vadd.f32 %v46, %v122
    %v124 = vpop.f32.mrb[0].mxu0
    %125 = vdwg.mxu0
    %vm126 = vcmask 80896
    %127 = vst.msk [vmem:[#allocation7] sm:$0xff] %vm126, %v123
    // Predicated region
    $region22: #{linear_pallas.1} parent=1 // pred_check
      _
    $region23: #{linear_pallas.1} parent=1 // pred_check_branch
      %129 = sbr.rel (0) target = $region25
    $region24: #{linear_pallas.1} parent=1 // pred_region
      %s131 = ssub.s32 128, 128
      %132 = vsyncadd [#allocation4], %s131
      %s134 = sshll.u32 [#allocation7], 4
      %s135 = int_to_ptr.vmem [resolvable:$true] %s134
      %137 = dma.vmem_to_hbm [thread:$0]  %s135, 128, %s3, [#allocation4]
    $region25: #{linear_pallas.1} parent=1 // pred_fallthru
      _
    // Predicated region
    $region26: #{linear_pallas.1} parent=1 // pred_check
      _
    $region27: #{linear_pallas.1} parent=1 // pred_check_branch
      %139 = sbr.rel (0) target = $region29
    $region28: #{linear_pallas.1} parent=1 // pred_region
      %140 = dma.done [#allocation4], 128
    $region29: #{linear_pallas.1} parent=1 // pred_fallthru
      _
    %141 = vsyncpa [#allocation3], 1
    %142 = vsyncpa [#allocation6], 1
    %143 = vsyncpa [#allocation4], 1

</llo_original>
